<compile_context>
chip_gen: v6e
topology: v6e:2x2x1
jax: 0.10.0
libtpu: 0.0.40
codegen_flags: <defaults>
</compile_context>

<pallas_src>
import functools

import jax
import jax.numpy as jnp
from jax.experimental import pallas as pl
from jax.experimental.pallas import tpu as pltpu

# Model hyper-parameters (PyTorch module defaults).
INPUT_DIMS = 1
OUTPUT_DIMS = 10
HIDDEN_DIMS = 16
DEPTH = 1          # feature_extractor channels = [hidden]*depth + [output]
KERNEL_SIZE = 3
CP = HIDDEN_DIMS   # padded channel width used everywhere inside the kernel (16)


# ------------------------- math helpers (kernel + reference) -------------------------

def _erf(x):
    # Abramowitz & Stegun 7.1.26 rational approximation (|err| < 1.5e-7).
    # Kept (instead of lax.erf) so lowering uses only exp / mul / add / div / where.
    a1, a2, a3, a4, a5 = 0.254829592, -0.284496736, 1.421413741, -1.453152027, 1.061405429
    p = 0.3275911
    s = jnp.where(x >= 0.0, 1.0, -1.0)
    ax = jnp.abs(x)
    t = 1.0 / (1.0 + p * ax)
    poly = ((((a5 * t + a4) * t + a3) * t + a2) * t + a1) * t
    return s * (1.0 - poly * jnp.exp(-ax * ax))


def _gelu(x):
    # erf-based GELU, matching torch.nn.functional.gelu default.
    return 0.5 * x * (1.0 + _erf(x * 0.7071067811865476))


# ------------------------------ Pallas kernel ------------------------------

def tsencoder_kernel(x_ref, mask_ref, wfc_ref, wp_ref, wconv_ref, bias_ref, out_ref):
    """One batch chunk. Activations are (C, Np) with Np = BB*T on the lane axis."""
    xr = x_ref[0]                       # (1, Np) raw input (input_dims == 1)
    masks = mask_ref[...]               # (4, 1, Np) f32 sample-boundary masks
    mL1, mR1, mL2, mR2 = masks[0], masks[1], masks[2], masks[3]

    # nan_mask = ~x.isnan().any(-1); x[~nan_mask] = 0
    valid = xr == xr                                    # False where NaN
    xv = jnp.where(valid, xr, 0.0)
    validf = jnp.where(valid, 1.0, 0.0)                 # (1, Np) float mask

    # input_fc: Linear(1 -> H) == outer product -> VPU broadcast multiply (no MXU).
    h = wfc_ref[...] * xv + bias_ref[0]                 # (CP,1)*(1,Np)+(CP,1) -> (CP,Np)
    # eval mode: mask = 'all_true' & nan_mask ; x[~mask] = 0
    h = h * validf

    def conv3(v, w_idx, b_idx, m_left, m_right, d):
        # Fused 3-tap dilated 'same' conv: one (CP, 3*CP) @ (3*CP, Np) matmul.
        n = v.shape[1]
        left = pltpu.roll(v, d, axis=1) * m_left        # v[:, t-d], zeroed outside sample
        right = pltpu.roll(v, n - d, axis=1) * m_right  # v[:, t+d], zeroed outside sample
        stacked = jnp.concatenate([left, v, right], axis=0)      # (3*CP, Np)
        return jnp.dot(wconv_ref[w_idx], stacked,
                       preferred_element_type=jnp.float32) + bias_ref[b_idx]

    # ConvBlock 0: H -> H, kernel 3, dilation 1, identity residual.
    res = h
    a = _gelu(h)
    a = conv3(a, 0, 1, mL1, mR1, 1)
    a = _gelu(a)
    a = conv3(a, 1, 2, mL1, mR1, 1)
    h = a + res

    # ConvBlock 1 (final): H -> O (zero-padded to CP), dilation 2, 1x1-conv projector residual.
    res = jnp.dot(wp_ref[...], h, preferred_element_type=jnp.float32) + bias_ref[3]
    a = _gelu(h)
    a = conv3(a, 2, 4, mL2, mR2, 2)
    a = _gelu(a)
    a = conv3(a, 3, 5, mL2, mR2, 2)
    out = a + res                       # rows OUTPUT_DIMS..CP-1 are exactly zero

    # repr_dropout: identity in eval mode.
    # TODO(synk): training-mode binomial/continuous masks and dropout not implemented.
    out_ref[...] = out[None].astype(out_ref.dtype)


# ------------------------------ host wrapper -------------------------------

def _flatten_conv(w_oik, b_o, cin_pad=CP, cout_pad=CP):
    """PyTorch Conv1d weight (Cout, Cin, K) -> fused-tap, padded (cout_pad, K*cin_pad)."""
    cout, cin, k = w_oik.shape
    w = jnp.transpose(w_oik, (0, 2, 1)).astype(jnp.float32)            # (Cout, K, Cin)
    w = jnp.pad(w, ((0, cout_pad - cout), (0, 0), (0, cin_pad - cin)))
    b = jnp.pad(b_o.astype(jnp.float32), (0, cout_pad - cout)).reshape(cout_pad, 1)
    return w.reshape(cout_pad, k * cin_pad), b


@functools.partial(jax.jit, static_argnames=("block_batch",))
def ts_encoder_forward(x, params, block_batch=None):
    """x: (B, T, INPUT_DIMS) float32 -> (B, T, OUTPUT_DIMS) float32 (eval-mode)."""
    B, T, D = x.shape
    assert D == INPUT_DIMS == 1, "kernel specialises the module default input_dims=1"

    if block_batch is None:
        # Target ~512 lanes per grid step without over-padding tiny batches.
        block_batch = max(1, min(B, max(1, 512 // T)))
    BB = int(block_batch)
    n_chunks = -(-B // BB)
    Bp = n_chunks * BB
    Np = BB * T
    # TODO(synk): for very long T, add a time-tiling grid axis with a 2*dilation halo.

    # Flatten (batch-chunk, time) onto the lane axis: (n_chunks, 1, BB*T).
    xf = x[..., 0].astype(jnp.float32)
    if Bp != B:
        xf = jnp.pad(xf, ((0, Bp - B), (0, 0)))
    x2 = xf.reshape(n_chunks, 1, Np)

    # Per-dilation sample-boundary masks so conv taps never cross samples.
    t_idx = jnp.arange(Np, dtype=jnp.int32) % T
    masks = jnp.stack([t_idx >= 1, t_idx < T - 1,
                       t_idx >= 2, t_idx < T - 2]).astype(jnp.float32)
    masks = masks.reshape(4, 1, Np)

    # Weights: channels-first, zero-padded to CP, conv taps fused along Cin.
    wfc = params["wfc"].astype(jnp.float32).reshape(CP, 1)
    bfc = params["bfc"].astype(jnp.float32).reshape(CP, 1)
    w1a, b1a = _flatten_conv(params["w1a"], params["b1a"])
    w1b, b1b = _flatten_conv(params["w1b"], params["b1b"])
    w2a, b2a = _flatten_conv(params["w2a"], params["b2a"])
    w2b, b2b = _flatten_conv(params["w2b"], params["b2b"])
    wp = jnp.pad(params["wp"].astype(jnp.float32), ((0, CP - OUTPUT_DIMS), (0, 0)))
    bp = jnp.pad(params["bp"].astype(jnp.float32), (0, CP - OUTPUT_DIMS)).reshape(CP, 1)
    wconv = jnp.stack([w1a, w1b, w2a, w2b])                 # (4, CP, 3*CP)
    bias = jnp.stack([bfc, b1a, b1b, bp, b2a, b2b])         # (6, CP, 1)

    out = pl.pallas_call(
        tsencoder_kernel,
        out_shape=jax.ShapeDtypeStruct((n_chunks, CP, Np), jnp.float32),
        grid=(n_chunks,),
        in_specs=[
            pl.BlockSpec((1, 1, Np), lambda i: (i, 0, 0)),          # input chunk
            pl.BlockSpec((4, 1, Np), lambda i: (0, 0, 0)),          # boundary masks
            pl.BlockSpec((CP, 1), lambda i: (0, 0)),                # input_fc weight
            pl.BlockSpec((CP, CP), lambda i: (0, 0)),               # projector weight
            pl.BlockSpec((4, CP, 3 * CP), lambda i: (0, 0, 0)),     # fused conv weights
            pl.BlockSpec((6, CP, 1), lambda i: (0, 0, 0)),          # all biases
        ],
        out_specs=pl.BlockSpec((1, CP, Np), lambda i: (i, 0, 0)),
        compiler_params=pltpu.CompilerParams(
            dimension_semantics=("parallel",)),
    )(x2, masks, wfc, wp, wconv, bias)

    # (n_chunks, CP, BB*T) -> (B, T, OUTPUT_DIMS)
    out = out[:, :OUTPUT_DIMS, :].reshape(n_chunks, OUTPUT_DIMS, BB, T)
    out = out.transpose(0, 2, 3, 1).reshape(Bp, T, OUTPUT_DIMS)
    return out[:B]


# ------------------------- params + pure-JAX reference -------------------------

def init_params(key):
    """Deterministic synthetic parameters in PyTorch layouts."""
    ks = jax.random.split(key, 13)
    n = lambda k, shape, scale=0.1: (scale * jax.random.normal(k, shape)).astype(jnp.float32)
    return dict(
        wfc=n(ks[0], (HIDDEN_DIMS, INPUT_DIMS)),                   # Linear weight (out, in)
        bfc=n(ks[1], (HIDDEN_DIMS,)),
        w1a=n(ks[2], (HIDDEN_DIMS, HIDDEN_DIMS, KERNEL_SIZE)),     # Conv1d weight (out, in, K)
        b1a=n(ks[3], (HIDDEN_DIMS,)),
        w1b=n(ks[4], (HIDDEN_DIMS, HIDDEN_DIMS, KERNEL_SIZE)),
        b1b=n(ks[5], (HIDDEN_DIMS,)),
        wp=n(ks[6], (OUTPUT_DIMS, HIDDEN_DIMS)),                   # projector Conv1d(H,O,1)
        bp=n(ks[7], (OUTPUT_DIMS,)),
        w2a=n(ks[8], (OUTPUT_DIMS, HIDDEN_DIMS, KERNEL_SIZE)),
        b2a=n(ks[9], (OUTPUT_DIMS,)),
        w2b=n(ks[10], (OUTPUT_DIMS, OUTPUT_DIMS, KERNEL_SIZE)),
        b2b=n(ks[11], (OUTPUT_DIMS,)),
    )


def _conv1d_same_ref(x, w, b, dilation):
    # x: (B, T, Cin); w: (Cout, Cin, K); SamePadConv with odd receptive field.
    B, T, _ = x.shape
    K = w.shape[-1]
    pad = (K - 1) * dilation // 2
    xp = jnp.pad(x, ((0, 0), (pad, pad), (0, 0)))
    out = jnp.zeros((B, T, w.shape[0]), jnp.float32) + b
    for k in range(K):
        out = out + jnp.einsum("btc,oc->bto",
                               xp[:, k * dilation:k * dilation + T, :], w[:, :, k])
    return out


def ts_encoder_reference(x, p):
    """Pure-JAX eval-mode reference (channels-last), used only to validate the kernel."""
    nan_row = ~jnp.any(jnp.isnan(x), axis=-1, keepdims=True)
    xz = jnp.where(nan_row, x, 0.0)
    h = xz @ p["wfc"].T.astype(jnp.float32) + p["bfc"]
    h = jnp.where(nan_row, h, 0.0)
    res = h
    a = _gelu(h)
    a = _conv1d_same_ref(a, p["w1a"], p["b1a"], 1)
    a = _gelu(a)
    a = _conv1d_same_ref(a, p["w1b"], p["b1b"], 1)
    h = a + res
    res = jnp.einsum("btc,oc->bto", h, p["wp"]) + p["bp"]
    a = _gelu(h)
    a = _conv1d_same_ref(a, p["w2a"], p["b2a"], 2)
    a = _gelu(a)
    a = _conv1d_same_ref(a, p["w2b"], p["b2b"], 2)
    return a + res


if __name__ == "__main__":
    key = jax.random.PRNGKey(0)
    k_param, k_data = jax.random.split(key)

    params = init_params(k_param)

    # Small deterministic input: batch=8, seq=16, input_dims=1 (BB*T = 128 lanes).
    B, T = 8, 16
    x = jax.random.normal(k_data, (B, T, INPUT_DIMS), dtype=jnp.float32)
    # Inject NaNs to exercise the nan_mask path (those timesteps are zeroed).
    x = x.at[0, 3, 0].set(jnp.nan)
    x = x.at[5, 10, 0].set(jnp.nan)

    out = ts_encoder_forward(x, params)
    out = jax.block_until_ready(out)

    assert out.shape == (B, T, OUTPUT_DIMS), out.shape
    assert out.dtype == jnp.float32
    assert bool(jnp.all(jnp.isfinite(out)))

    ref = ts_encoder_reference(x, params)
    max_err = float(jnp.max(jnp.abs(out - ref)))
    assert max_err < 1e-3, f"kernel vs reference mismatch: {max_err}"

    print("KERNEL_OK")
</pallas_src>

<mosaic_0001>
module attributes {stable_mosaic.version = 11 : i64} {
  func.func @tsencoder_kernel(%arg0: i32, %arg1: memref<1x1x128xf32, #tpu.memory_space<vmem>>, %arg2: memref<4x1x128xf32, #tpu.memory_space<vmem>>, %arg3: memref<16x1xf32, #tpu.memory_space<vmem>>, %arg4: memref<16x16xf32, #tpu.memory_space<vmem>>, %arg5: memref<4x16x48xf32, #tpu.memory_space<vmem>>, %arg6: memref<6x16x1xf32, #tpu.memory_space<vmem>>, %arg7: memref<1x16x128xf32, #tpu.memory_space<vmem>>) attributes {dimension_semantics = [#tpu.dimension_semantics<parallel>], iteration_bounds = array<i64: 1>, scalar_prefetch = 0 : i64, scratch_operands = 0 : i64, tpu.core_type = #tpu.core_type<tc>, window_params = [{transform_indices = @transform_0, window_bounds = array<i64: 1, 1, 128>}, {pipeline_mode = #tpu.pipeline_mode<synchronous>, transform_indices = @transform_1, window_bounds = array<i64: 4, 1, 128>}, {pipeline_mode = #tpu.pipeline_mode<synchronous>, transform_indices = @transform_2, window_bounds = array<i64: 16, 1>}, {pipeline_mode = #tpu.pipeline_mode<synchronous>, transform_indices = @transform_3, window_bounds = array<i64: 16, 16>}, {pipeline_mode = #tpu.pipeline_mode<synchronous>, transform_indices = @transform_4, window_bounds = array<i64: 4, 16, 48>}, {pipeline_mode = #tpu.pipeline_mode<synchronous>, transform_indices = @transform_5, window_bounds = array<i64: 6, 16, 1>}, {transform_indices = @transform_6, window_bounds = array<i64: 1, 16, 128>}]} {
    %c0 = arith.constant 0 : index
    %c0_0 = arith.constant 0 : index
    %c0_1 = arith.constant 0 : index
    %0 = vector.load %arg1[%c0, %c0_0, %c0_1] : memref<1x1x128xf32, #tpu.memory_space<vmem>>, vector<1x1x128xf32>
    %1 = vector.shape_cast %0 : vector<1x1x128xf32> to vector<1x128xf32>
    %c0_2 = arith.constant 0 : index
    %c0_3 = arith.constant 0 : index
    %c0_4 = arith.constant 0 : index
    %2 = vector.load %arg2[%c0_2, %c0_3, %c0_4] : memref<4x1x128xf32, #tpu.memory_space<vmem>>, vector<4x1x128xf32>
    %3 = vector.extract_strided_slice %2 {offsets = [0, 0, 0], sizes = [1, 1, 128], strides = [1, 1, 1]} : vector<4x1x128xf32> to vector<1x1x128xf32>
    %4 = vector.shape_cast %3 : vector<1x1x128xf32> to vector<1x128xf32>
    %5 = vector.extract_strided_slice %2 {offsets = [1, 0, 0], sizes = [1, 1, 128], strides = [1, 1, 1]} : vector<4x1x128xf32> to vector<1x1x128xf32>
    %6 = vector.shape_cast %5 : vector<1x1x128xf32> to vector<1x128xf32>
    %7 = vector.extract_strided_slice %2 {offsets = [2, 0, 0], sizes = [1, 1, 128], strides = [1, 1, 1]} : vector<4x1x128xf32> to vector<1x1x128xf32>
    %8 = vector.shape_cast %7 : vector<1x1x128xf32> to vector<1x128xf32>
    %9 = vector.extract_strided_slice %2 {offsets = [3, 0, 0], sizes = [1, 1, 128], strides = [1, 1, 1]} : vector<4x1x128xf32> to vector<1x1x128xf32>
    %10 = vector.shape_cast %9 : vector<1x1x128xf32> to vector<1x128xf32>
    %11 = arith.cmpf oeq, %1, %1 : vector<1x128xf32>
    %cst = arith.constant 0.000000e+00 : f32
    %12 = vector.broadcast %cst : f32 to vector<1x128xf32>
    %13 = arith.select %11, %1, %12 : vector<1x128xi1>, vector<1x128xf32>
    %cst_5 = arith.constant 1.000000e+00 : f32
    %cst_6 = arith.constant 0.000000e+00 : f32
    %14 = vector.broadcast %cst_5 : f32 to vector<1x128xf32>
    %15 = vector.broadcast %cst_6 : f32 to vector<1x128xf32>
    %16 = arith.select %11, %14, %15 : vector<1x128xi1>, vector<1x128xf32>
    %c0_7 = arith.constant 0 : index
    %c0_8 = arith.constant 0 : index
    %17 = vector.load %arg3[%c0_7, %c0_8] : memref<16x1xf32, #tpu.memory_space<vmem>>, vector<16x1xf32>
    %18 = vector.broadcast %17 : vector<16x1xf32> to vector<16x128xf32>
    %19 = vector.broadcast %13 : vector<1x128xf32> to vector<16x128xf32>
    %20 = arith.mulf %18, %19 : vector<16x128xf32>
    %c0_9 = arith.constant 0 : index
    %c0_10 = arith.constant 0 : index
    %c0_11 = arith.constant 0 : index
    %21 = vector.load %arg6[%c0_9, %c0_10, %c0_11] : memref<6x16x1xf32, #tpu.memory_space<vmem>>, vector<1x16x1xf32>
    %22 = vector.shape_cast %21 : vector<1x16x1xf32> to vector<16x1xf32>
    %23 = vector.broadcast %22 : vector<16x1xf32> to vector<16x128xf32>
    %24 = arith.addf %20, %23 : vector<16x128xf32>
    %25 = vector.broadcast %16 : vector<1x128xf32> to vector<16x128xf32>
    %26 = arith.mulf %24, %25 : vector<16x128xf32>
    %cst_12 = arith.constant 5.000000e-01 : f32
    %27 = vector.broadcast %cst_12 : f32 to vector<16x128xf32>
    %28 = arith.mulf %27, %26 : vector<16x128xf32>
    %cst_13 = arith.constant 0.707106769 : f32
    %29 = vector.broadcast %cst_13 : f32 to vector<16x128xf32>
    %30 = arith.mulf %26, %29 : vector<16x128xf32>
    %cst_14 = arith.constant 0.000000e+00 : f32
    %31 = vector.broadcast %cst_14 : f32 to vector<16x128xf32>
    %32 = arith.cmpf oge, %30, %31 : vector<16x128xf32>
    %cst_15 = arith.constant 1.000000e+00 : f32
    %cst_16 = arith.constant -1.000000e+00 : f32
    %33 = vector.broadcast %cst_15 : f32 to vector<16x128xf32>
    %34 = vector.broadcast %cst_16 : f32 to vector<16x128xf32>
    %35 = arith.select %32, %33, %34 : vector<16x128xi1>, vector<16x128xf32>
    %36 = math.absf %30 : vector<16x128xf32>
    %cst_17 = arith.constant 0.327591091 : f32
    %37 = vector.broadcast %cst_17 : f32 to vector<16x128xf32>
    %38 = arith.mulf %37, %36 : vector<16x128xf32>
    %cst_18 = arith.constant 1.000000e+00 : f32
    %39 = vector.broadcast %cst_18 : f32 to vector<16x128xf32>
    %40 = arith.addf %39, %38 : vector<16x128xf32>
    %cst_19 = arith.constant 1.000000e+00 : f32
    %41 = vector.broadcast %cst_19 : f32 to vector<16x128xf32>
    %42 = arith.divf %41, %40 : vector<16x128xf32>
    %cst_20 = arith.constant 1.06140542 : f32
    %43 = vector.broadcast %cst_20 : f32 to vector<16x128xf32>
    %44 = arith.mulf %43, %42 : vector<16x128xf32>
    %cst_21 = arith.constant -1.45315206 : f32
    %45 = vector.broadcast %cst_21 : f32 to vector<16x128xf32>
    %46 = arith.addf %44, %45 : vector<16x128xf32>
    %47 = arith.mulf %46, %42 : vector<16x128xf32>
    %cst_22 = arith.constant 1.42141378 : f32
    %48 = vector.broadcast %cst_22 : f32 to vector<16x128xf32>
    %49 = arith.addf %47, %48 : vector<16x128xf32>
    %50 = arith.mulf %49, %42 : vector<16x128xf32>
    %cst_23 = arith.constant -0.284496725 : f32
    %51 = vector.broadcast %cst_23 : f32 to vector<16x128xf32>
    %52 = arith.addf %50, %51 : vector<16x128xf32>
    %53 = arith.mulf %52, %42 : vector<16x128xf32>
    %cst_24 = arith.constant 0.254829586 : f32
    %54 = vector.broadcast %cst_24 : f32 to vector<16x128xf32>
    %55 = arith.addf %53, %54 : vector<16x128xf32>
    %56 = arith.mulf %55, %42 : vector<16x128xf32>
    %cst_25 = arith.constant 0.000000e+00 : f32
    %57 = vector.broadcast %cst_25 : f32 to vector<16x128xf32>
    %58 = arith.subf %57, %36 : vector<16x128xf32>
    %59 = arith.mulf %58, %36 : vector<16x128xf32>
    %60 = math.exp %59 : vector<16x128xf32>
    %61 = arith.mulf %56, %60 : vector<16x128xf32>
    %cst_26 = arith.constant 1.000000e+00 : f32
    %62 = vector.broadcast %cst_26 : f32 to vector<16x128xf32>
    %63 = arith.subf %62, %61 : vector<16x128xf32>
    %64 = arith.mulf %35, %63 : vector<16x128xf32>
    %cst_27 = arith.constant 1.000000e+00 : f32
    %65 = vector.broadcast %cst_27 : f32 to vector<16x128xf32>
    %66 = arith.addf %65, %64 : vector<16x128xf32>
    %67 = arith.mulf %28, %66 : vector<16x128xf32>
    %c1_i32 = arith.constant 1 : i32
    %68 = tpu.dynamic_rotate %67 by %c1_i32 dim 1 : vector<16x128xf32>, i32 -> vector<16x128xf32>
    %69 = vector.broadcast %4 : vector<1x128xf32> to vector<16x128xf32>
    %70 = arith.mulf %68, %69 : vector<16x128xf32>
    %c127_i32 = arith.constant 127 : i32
    %71 = tpu.dynamic_rotate %67 by %c127_i32 dim 1 : vector<16x128xf32>, i32 -> vector<16x128xf32>
    %72 = vector.broadcast %6 : vector<1x128xf32> to vector<16x128xf32>
    %73 = arith.mulf %71, %72 : vector<16x128xf32>
    %74 = tpu.concatenate %70, %67, %73 in 0 : vector<16x128xf32>, vector<16x128xf32>, vector<16x128xf32> -> vector<48x128xf32>
    %c0_28 = arith.constant 0 : index
    %c0_29 = arith.constant 0 : index
    %c0_30 = arith.constant 0 : index
    %75 = vector.load %arg5[%c0_28, %c0_29, %c0_30] : memref<4x16x48xf32, #tpu.memory_space<vmem>>, vector<1x16x48xf32>
    %76 = vector.shape_cast %75 : vector<1x16x48xf32> to vector<16x48xf32>
    %cst_31 = arith.constant dense<0.000000e+00> : vector<16x128xf32>
    %77 = tpu.matmul %76, %74, %cst_31 {dimension_numbers = #tpu.dot_dimension_numbers<[1], [0], [0], [1], [0, 0, 1, 1], [], []>} : vector<16x48xf32>, vector<48x128xf32>, vector<16x128xf32> -> vector<16x128xf32>
    %c1 = arith.constant 1 : index
    %c0_32 = arith.constant 0 : index
    %c0_33 = arith.constant 0 : index
    %78 = vector.load %arg6[%c1, %c0_32, %c0_33] : memref<6x16x1xf32, #tpu.memory_space<vmem>>, vector<1x16x1xf32>
    %79 = vector.shape_cast %78 : vector<1x16x1xf32> to vector<16x1xf32>
    %80 = vector.broadcast %79 : vector<16x1xf32> to vector<16x128xf32>
    %81 = arith.addf %77, %80 : vector<16x128xf32>
    %cst_34 = arith.constant 5.000000e-01 : f32
    %82 = vector.broadcast %cst_34 : f32 to vector<16x128xf32>
    %83 = arith.mulf %82, %81 : vector<16x128xf32>
    %cst_35 = arith.constant 0.707106769 : f32
    %84 = vector.broadcast %cst_35 : f32 to vector<16x128xf32>
    %85 = arith.mulf %81, %84 : vector<16x128xf32>
    %cst_36 = arith.constant 0.000000e+00 : f32
    %86 = vector.broadcast %cst_36 : f32 to vector<16x128xf32>
    %87 = arith.cmpf oge, %85, %86 : vector<16x128xf32>
    %cst_37 = arith.constant 1.000000e+00 : f32
    %cst_38 = arith.constant -1.000000e+00 : f32
    %88 = vector.broadcast %cst_37 : f32 to vector<16x128xf32>
    %89 = vector.broadcast %cst_38 : f32 to vector<16x128xf32>
    %90 = arith.select %87, %88, %89 : vector<16x128xi1>, vector<16x128xf32>
    %91 = math.absf %85 : vector<16x128xf32>
    %cst_39 = arith.constant 0.327591091 : f32
    %92 = vector.broadcast %cst_39 : f32 to vector<16x128xf32>
    %93 = arith.mulf %92, %91 : vector<16x128xf32>
    %cst_40 = arith.constant 1.000000e+00 : f32
    %94 = vector.broadcast %cst_40 : f32 to vector<16x128xf32>
    %95 = arith.addf %94, %93 : vector<16x128xf32>
    %cst_41 = arith.constant 1.000000e+00 : f32
    %96 = vector.broadcast %cst_41 : f32 to vector<16x128xf32>
    %97 = arith.divf %96, %95 : vector<16x128xf32>
    %cst_42 = arith.constant 1.06140542 : f32
    %98 = vector.broadcast %cst_42 : f32 to vector<16x128xf32>
    %99 = arith.mulf %98, %97 : vector<16x128xf32>
    %cst_43 = arith.constant -1.45315206 : f32
    %100 = vector.broadcast %cst_43 : f32 to vector<16x128xf32>
    %101 = arith.addf %99, %100 : vector<16x128xf32>
    %102 = arith.mulf %101, %97 : vector<16x128xf32>
    %cst_44 = arith.constant 1.42141378 : f32
    %103 = vector.broadcast %cst_44 : f32 to vector<16x128xf32>
    %104 = arith.addf %102, %103 : vector<16x128xf32>
    %105 = arith.mulf %104, %97 : vector<16x128xf32>
    %cst_45 = arith.constant -0.284496725 : f32
    %106 = vector.broadcast %cst_45 : f32 to vector<16x128xf32>
    %107 = arith.addf %105, %106 : vector<16x128xf32>
    %108 = arith.mulf %107, %97 : vector<16x128xf32>
    %cst_46 = arith.constant 0.254829586 : f32
    %109 = vector.broadcast %cst_46 : f32 to vector<16x128xf32>
    %110 = arith.addf %108, %109 : vector<16x128xf32>
    %111 = arith.mulf %110, %97 : vector<16x128xf32>
    %cst_47 = arith.constant 0.000000e+00 : f32
    %112 = vector.broadcast %cst_47 : f32 to vector<16x128xf32>
    %113 = arith.subf %112, %91 : vector<16x128xf32>
    %114 = arith.mulf %113, %91 : vector<16x128xf32>
    %115 = math.exp %114 : vector<16x128xf32>
    %116 = arith.mulf %111, %115 : vector<16x128xf32>
    %cst_48 = arith.constant 1.000000e+00 : f32
    %117 = vector.broadcast %cst_48 : f32 to vector<16x128xf32>
    %118 = arith.subf %117, %116 : vector<16x128xf32>
    %119 = arith.mulf %90, %118 : vector<16x128xf32>
    %cst_49 = arith.constant 1.000000e+00 : f32
    %120 = vector.broadcast %cst_49 : f32 to vector<16x128xf32>
    %121 = arith.addf %120, %119 : vector<16x128xf32>
    %122 = arith.mulf %83, %121 : vector<16x128xf32>
    %c1_i32_50 = arith.constant 1 : i32
    %123 = tpu.dynamic_rotate %122 by %c1_i32_50 dim 1 : vector<16x128xf32>, i32 -> vector<16x128xf32>
    %124 = vector.broadcast %4 : vector<1x128xf32> to vector<16x128xf32>
    %125 = arith.mulf %123, %124 : vector<16x128xf32>
    %c127_i32_51 = arith.constant 127 : i32
    %126 = tpu.dynamic_rotate %122 by %c127_i32_51 dim 1 : vector<16x128xf32>, i32 -> vector<16x128xf32>
    %127 = vector.broadcast %6 : vector<1x128xf32> to vector<16x128xf32>
    %128 = arith.mulf %126, %127 : vector<16x128xf32>
    %129 = tpu.concatenate %125, %122, %128 in 0 : vector<16x128xf32>, vector<16x128xf32>, vector<16x128xf32> -> vector<48x128xf32>
    %c1_52 = arith.constant 1 : index
    %c0_53 = arith.constant 0 : index
    %c0_54 = arith.constant 0 : index
    %130 = vector.load %arg5[%c1_52, %c0_53, %c0_54] : memref<4x16x48xf32, #tpu.memory_space<vmem>>, vector<1x16x48xf32>
    %131 = vector.shape_cast %130 : vector<1x16x48xf32> to vector<16x48xf32>
    %cst_55 = arith.constant dense<0.000000e+00> : vector<16x128xf32>
    %132 = tpu.matmul %131, %129, %cst_55 {dimension_numbers = #tpu.dot_dimension_numbers<[1], [0], [0], [1], [0, 0, 1, 1], [], []>} : vector<16x48xf32>, vector<48x128xf32>, vector<16x128xf32> -> vector<16x128xf32>
    %c2 = arith.constant 2 : index
    %c0_56 = arith.constant 0 : index
    %c0_57 = arith.constant 0 : index
    %133 = vector.load %arg6[%c2, %c0_56, %c0_57] : memref<6x16x1xf32, #tpu.memory_space<vmem>>, vector<1x16x1xf32>
    %134 = vector.shape_cast %133 : vector<1x16x1xf32> to vector<16x1xf32>
    %135 = vector.broadcast %134 : vector<16x1xf32> to vector<16x128xf32>
    %136 = arith.addf %132, %135 : vector<16x128xf32>
    %137 = arith.addf %136, %26 : vector<16x128xf32>
    %c0_58 = arith.constant 0 : index
    %c0_59 = arith.constant 0 : index
    %138 = vector.load %arg4[%c0_58, %c0_59] : memref<16x16xf32, #tpu.memory_space<vmem>>, vector<16x16xf32>
    %cst_60 = arith.constant dense<0.000000e+00> : vector<16x128xf32>
    %139 = tpu.matmul %138, %137, %cst_60 {dimension_numbers = #tpu.dot_dimension_numbers<[1], [0], [0], [1], [0, 0, 1, 1], [], []>} : vector<16x16xf32>, vector<16x128xf32>, vector<16x128xf32> -> vector<16x128xf32>
    %c3 = arith.constant 3 : index
    %c0_61 = arith.constant 0 : index
    %c0_62 = arith.constant 0 : index
    %140 = vector.load %arg6[%c3, %c0_61, %c0_62] : memref<6x16x1xf32, #tpu.memory_space<vmem>>, vector<1x16x1xf32>
    %141 = vector.shape_cast %140 : vector<1x16x1xf32> to vector<16x1xf32>
    %142 = vector.broadcast %141 : vector<16x1xf32> to vector<16x128xf32>
    %143 = arith.addf %139, %142 : vector<16x128xf32>
    %cst_63 = arith.constant 5.000000e-01 : f32
    %144 = vector.broadcast %cst_63 : f32 to vector<16x128xf32>
    %145 = arith.mulf %144, %137 : vector<16x128xf32>
    %cst_64 = arith.constant 0.707106769 : f32
    %146 = vector.broadcast %cst_64 : f32 to vector<16x128xf32>
    %147 = arith.mulf %137, %146 : vector<16x128xf32>
    %cst_65 = arith.constant 0.000000e+00 : f32
    %148 = vector.broadcast %cst_65 : f32 to vector<16x128xf32>
    %149 = arith.cmpf oge, %147, %148 : vector<16x128xf32>
    %cst_66 = arith.constant 1.000000e+00 : f32
    %cst_67 = arith.constant -1.000000e+00 : f32
    %150 = vector.broadcast %cst_66 : f32 to vector<16x128xf32>
    %151 = vector.broadcast %cst_67 : f32 to vector<16x128xf32>
    %152 = arith.select %149, %150, %151 : vector<16x128xi1>, vector<16x128xf32>
    %153 = math.absf %147 : vector<16x128xf32>
    %cst_68 = arith.constant 0.327591091 : f32
    %154 = vector.broadcast %cst_68 : f32 to vector<16x128xf32>
    %155 = arith.mulf %154, %153 : vector<16x128xf32>
    %cst_69 = arith.constant 1.000000e+00 : f32
    %156 = vector.broadcast %cst_69 : f32 to vector<16x128xf32>
    %157 = arith.addf %156, %155 : vector<16x128xf32>
    %cst_70 = arith.constant 1.000000e+00 : f32
    %158 = vector.broadcast %cst_70 : f32 to vector<16x128xf32>
    %159 = arith.divf %158, %157 : vector<16x128xf32>
    %cst_71 = arith.constant 1.06140542 : f32
    %160 = vector.broadcast %cst_71 : f32 to vector<16x128xf32>
    %161 = arith.mulf %160, %159 : vector<16x128xf32>
    %cst_72 = arith.constant -1.45315206 : f32
    %162 = vector.broadcast %cst_72 : f32 to vector<16x128xf32>
    %163 = arith.addf %161, %162 : vector<16x128xf32>
    %164 = arith.mulf %163, %159 : vector<16x128xf32>
    %cst_73 = arith.constant 1.42141378 : f32
    %165 = vector.broadcast %cst_73 : f32 to vector<16x128xf32>
    %166 = arith.addf %164, %165 : vector<16x128xf32>
    %167 = arith.mulf %166, %159 : vector<16x128xf32>
    %cst_74 = arith.constant -0.284496725 : f32
    %168 = vector.broadcast %cst_74 : f32 to vector<16x128xf32>
    %169 = arith.addf %167, %168 : vector<16x128xf32>
    %170 = arith.mulf %169, %159 : vector<16x128xf32>
    %cst_75 = arith.constant 0.254829586 : f32
    %171 = vector.broadcast %cst_75 : f32 to vector<16x128xf32>
    %172 = arith.addf %170, %171 : vector<16x128xf32>
    %173 = arith.mulf %172, %159 : vector<16x128xf32>
    %cst_76 = arith.constant 0.000000e+00 : f32
    %174 = vector.broadcast %cst_76 : f32 to vector<16x128xf32>
    %175 = arith.subf %174, %153 : vector<16x128xf32>
    %176 = arith.mulf %175, %153 : vector<16x128xf32>
    %177 = math.exp %176 : vector<16x128xf32>
    %178 = arith.mulf %173, %177 : vector<16x128xf32>
    %cst_77 = arith.constant 1.000000e+00 : f32
    %179 = vector.broadcast %cst_77 : f32 to vector<16x128xf32>
    %180 = arith.subf %179, %178 : vector<16x128xf32>
    %181 = arith.mulf %152, %180 : vector<16x128xf32>
    %cst_78 = arith.constant 1.000000e+00 : f32
    %182 = vector.broadcast %cst_78 : f32 to vector<16x128xf32>
    %183 = arith.addf %182, %181 : vector<16x128xf32>
    %184 = arith.mulf %145, %183 : vector<16x128xf32>
    %c2_i32 = arith.constant 2 : i32
    %185 = tpu.dynamic_rotate %184 by %c2_i32 dim 1 : vector<16x128xf32>, i32 -> vector<16x128xf32>
    %186 = vector.broadcast %8 : vector<1x128xf32> to vector<16x128xf32>
    %187 = arith.mulf %185, %186 : vector<16x128xf32>
    %c126_i32 = arith.constant 126 : i32
    %188 = tpu.dynamic_rotate %184 by %c126_i32 dim 1 : vector<16x128xf32>, i32 -> vector<16x128xf32>
    %189 = vector.broadcast %10 : vector<1x128xf32> to vector<16x128xf32>
    %190 = arith.mulf %188, %189 : vector<16x128xf32>
    %191 = tpu.concatenate %187, %184, %190 in 0 : vector<16x128xf32>, vector<16x128xf32>, vector<16x128xf32> -> vector<48x128xf32>
    %c2_79 = arith.constant 2 : index
    %c0_80 = arith.constant 0 : index
    %c0_81 = arith.constant 0 : index
    %192 = vector.load %arg5[%c2_79, %c0_80, %c0_81] : memref<4x16x48xf32, #tpu.memory_space<vmem>>, vector<1x16x48xf32>
    %193 = vector.shape_cast %192 : vector<1x16x48xf32> to vector<16x48xf32>
    %cst_82 = arith.constant dense<0.000000e+00> : vector<16x128xf32>
    %194 = tpu.matmul %193, %191, %cst_82 {dimension_numbers = #tpu.dot_dimension_numbers<[1], [0], [0], [1], [0, 0, 1, 1], [], []>} : vector<16x48xf32>, vector<48x128xf32>, vector<16x128xf32> -> vector<16x128xf32>
    %c4 = arith.constant 4 : index
    %c0_83 = arith.constant 0 : index
    %c0_84 = arith.constant 0 : index
    %195 = vector.load %arg6[%c4, %c0_83, %c0_84] : memref<6x16x1xf32, #tpu.memory_space<vmem>>, vector<1x16x1xf32>
    %196 = vector.shape_cast %195 : vector<1x16x1xf32> to vector<16x1xf32>
    %197 = vector.broadcast %196 : vector<16x1xf32> to vector<16x128xf32>
    %198 = arith.addf %194, %197 : vector<16x128xf32>
    %cst_85 = arith.constant 5.000000e-01 : f32
    %199 = vector.broadcast %cst_85 : f32 to vector<16x128xf32>
    %200 = arith.mulf %199, %198 : vector<16x128xf32>
    %cst_86 = arith.constant 0.707106769 : f32
    %201 = vector.broadcast %cst_86 : f32 to vector<16x128xf32>
    %202 = arith.mulf %198, %201 : vector<16x128xf32>
    %cst_87 = arith.constant 0.000000e+00 : f32
    %203 = vector.broadcast %cst_87 : f32 to vector<16x128xf32>
    %204 = arith.cmpf oge, %202, %203 : vector<16x128xf32>
    %cst_88 = arith.constant 1.000000e+00 : f32
    %cst_89 = arith.constant -1.000000e+00 : f32
    %205 = vector.broadcast %cst_88 : f32 to vector<16x128xf32>
    %206 = vector.broadcast %cst_89 : f32 to vector<16x128xf32>
    %207 = arith.select %204, %205, %206 : vector<16x128xi1>, vector<16x128xf32>
    %208 = math.absf %202 : vector<16x128xf32>
    %cst_90 = arith.constant 0.327591091 : f32
    %209 = vector.broadcast %cst_90 : f32 to vector<16x128xf32>
    %210 = arith.mulf %209, %208 : vector<16x128xf32>
    %cst_91 = arith.constant 1.000000e+00 : f32
    %211 = vector.broadcast %cst_91 : f32 to vector<16x128xf32>
    %212 = arith.addf %211, %210 : vector<16x128xf32>
    %cst_92 = arith.constant 1.000000e+00 : f32
    %213 = vector.broadcast %cst_92 : f32 to vector<16x128xf32>
    %214 = arith.divf %213, %212 : vector<16x128xf32>
    %cst_93 = arith.constant 1.06140542 : f32
    %215 = vector.broadcast %cst_93 : f32 to vector<16x128xf32>
    %216 = arith.mulf %215, %214 : vector<16x128xf32>
    %cst_94 = arith.constant -1.45315206 : f32
    %217 = vector.broadcast %cst_94 : f32 to vector<16x128xf32>
    %218 = arith.addf %216, %217 : vector<16x128xf32>
    %219 = arith.mulf %218, %214 : vector<16x128xf32>
    %cst_95 = arith.constant 1.42141378 : f32
    %220 = vector.broadcast %cst_95 : f32 to vector<16x128xf32>
    %221 = arith.addf %219, %220 : vector<16x128xf32>
    %222 = arith.mulf %221, %214 : vector<16x128xf32>
    %cst_96 = arith.constant -0.284496725 : f32
    %223 = vector.broadcast %cst_96 : f32 to vector<16x128xf32>
    %224 = arith.addf %222, %223 : vector<16x128xf32>
    %225 = arith.mulf %224, %214 : vector<16x128xf32>
    %cst_97 = arith.constant 0.254829586 : f32
    %226 = vector.broadcast %cst_97 : f32 to vector<16x128xf32>
    %227 = arith.addf %225, %226 : vector<16x128xf32>
    %228 = arith.mulf %227, %214 : vector<16x128xf32>
    %cst_98 = arith.constant 0.000000e+00 : f32
    %229 = vector.broadcast %cst_98 : f32 to vector<16x128xf32>
    %230 = arith.subf %229, %208 : vector<16x128xf32>
    %231 = arith.mulf %230, %208 : vector<16x128xf32>
    %232 = math.exp %231 : vector<16x128xf32>
    %233 = arith.mulf %228, %232 : vector<16x128xf32>
    %cst_99 = arith.constant 1.000000e+00 : f32
    %234 = vector.broadcast %cst_99 : f32 to vector<16x128xf32>
    %235 = arith.subf %234, %233 : vector<16x128xf32>
    %236 = arith.mulf %207, %235 : vector<16x128xf32>
    %cst_100 = arith.constant 1.000000e+00 : f32
    %237 = vector.broadcast %cst_100 : f32 to vector<16x128xf32>
    %238 = arith.addf %237, %236 : vector<16x128xf32>
    %239 = arith.mulf %200, %238 : vector<16x128xf32>
    %c2_i32_101 = arith.constant 2 : i32
    %240 = tpu.dynamic_rotate %239 by %c2_i32_101 dim 1 : vector<16x128xf32>, i32 -> vector<16x128xf32>
    %241 = vector.broadcast %8 : vector<1x128xf32> to vector<16x128xf32>
    %242 = arith.mulf %240, %241 : vector<16x128xf32>
    %c126_i32_102 = arith.constant 126 : i32
    %243 = tpu.dynamic_rotate %239 by %c126_i32_102 dim 1 : vector<16x128xf32>, i32 -> vector<16x128xf32>
    %244 = vector.broadcast %10 : vector<1x128xf32> to vector<16x128xf32>
    %245 = arith.mulf %243, %244 : vector<16x128xf32>
    %246 = tpu.concatenate %242, %239, %245 in 0 : vector<16x128xf32>, vector<16x128xf32>, vector<16x128xf32> -> vector<48x128xf32>
    %c3_103 = arith.constant 3 : index
    %c0_104 = arith.constant 0 : index
    %c0_105 = arith.constant 0 : index
    %247 = vector.load %arg5[%c3_103, %c0_104, %c0_105] : memref<4x16x48xf32, #tpu.memory_space<vmem>>, vector<1x16x48xf32>
    %248 = vector.shape_cast %247 : vector<1x16x48xf32> to vector<16x48xf32>
    %cst_106 = arith.constant dense<0.000000e+00> : vector<16x128xf32>
    %249 = tpu.matmul %248, %246, %cst_106 {dimension_numbers = #tpu.dot_dimension_numbers<[1], [0], [0], [1], [0, 0, 1, 1], [], []>} : vector<16x48xf32>, vector<48x128xf32>, vector<16x128xf32> -> vector<16x128xf32>
    %c5 = arith.constant 5 : index
    %c0_107 = arith.constant 0 : index
    %c0_108 = arith.constant 0 : index
    %250 = vector.load %arg6[%c5, %c0_107, %c0_108] : memref<6x16x1xf32, #tpu.memory_space<vmem>>, vector<1x16x1xf32>
    %251 = vector.shape_cast %250 : vector<1x16x1xf32> to vector<16x1xf32>
    %252 = vector.broadcast %251 : vector<16x1xf32> to vector<16x128xf32>
    %253 = arith.addf %249, %252 : vector<16x128xf32>
    %254 = arith.addf %253, %143 : vector<16x128xf32>
    %255 = vector.shape_cast %254 : vector<16x128xf32> to vector<1x16x128xf32>
    %c0_109 = arith.constant 0 : index
    %c0_110 = arith.constant 0 : index
    %c0_111 = arith.constant 0 : index
    %256 = vector.load %arg7[%c0_109, %c0_110, %c0_111] : memref<1x16x128xf32, #tpu.memory_space<vmem>>, vector<1x16x128xf32>
    tpu.vector_store %arg7[%c0_109, %c0_110, %c0_111], %255 {strides = array<i32>} : memref<1x16x128xf32, #tpu.memory_space<vmem>>, vector<1x16x128xf32>,
    return
  }
  func.func @transform_0(%arg0: i32) -> (i32, i32, i32) {
    %c0_i32 = arith.constant 0 : i32
    %c0_i32_0 = arith.constant 0 : i32
    %c0_i32_1 = arith.constant 0 : i32
    return %arg0, %c0_i32, %c0_i32_0 : i32, i32, i32
  }
  func.func @transform_1(%arg0: i32) -> (i32, i32, i32) {
    %c0_i32 = arith.constant 0 : i32
    %c0_i32_0 = arith.constant 0 : i32
    %c0_i32_1 = arith.constant 0 : i32
    %c0_i32_2 = arith.constant 0 : i32
    return %c0_i32, %c0_i32_0, %c0_i32_1 : i32, i32, i32
  }
  func.func @transform_2(%arg0: i32) -> (i32, i32) {
    %c0_i32 = arith.constant 0 : i32
    %c0_i32_0 = arith.constant 0 : i32
    %c0_i32_1 = arith.constant 0 : i32
    return %c0_i32, %c0_i32_0 : i32, i32
  }
  func.func @transform_3(%arg0: i32) -> (i32, i32) {
    %c0_i32 = arith.constant 0 : i32
    %c0_i32_0 = arith.constant 0 : i32
    %c0_i32_1 = arith.constant 0 : i32
    return %c0_i32, %c0_i32_0 : i32, i32
  }
  func.func @transform_4(%arg0: i32) -> (i32, i32, i32) {
    %c0_i32 = arith.constant 0 : i32
    %c0_i32_0 = arith.constant 0 : i32
    %c0_i32_1 = arith.constant 0 : i32
    %c0_i32_2 = arith.constant 0 : i32
    return %c0_i32, %c0_i32_0, %c0_i32_1 : i32, i32, i32
  }
  func.func @transform_5(%arg0: i32) -> (i32, i32, i32) {
    %c0_i32 = arith.constant 0 : i32
    %c0_i32_0 = arith.constant 0 : i32
    %c0_i32_1 = arith.constant 0 : i32
    %c0_i32_2 = arith.constant 0 : i32
    return %c0_i32, %c0_i32_0, %c0_i32_1 : i32, i32, i32
  }
  func.func @transform_6(%arg0: i32) -> (i32, i32, i32) {
    %c0_i32 = arith.constant 0 : i32
    %c0_i32_0 = arith.constant 0 : i32
    %c0_i32_1 = arith.constant 0 : i32
    return %arg0, %c0_i32, %c0_i32_0 : i32, i32, i32
  }
}

</mosaic_0001>

<llo_original>
// kernel: squeeze.1
$region0: #{squeeze.1}
  %s0 = inlined_call_operand.vmem [shape: f32[8,16], index: 0, kind: input, shape index: {}]
  %s1 = inlined_call_operand.vmem [shape: f32[1,1,128], index: 1, kind: output, shape index: {}]
  $region1: #{squeeze.1} parent=0
    #allocation0 [shape = 'u8[4096]{0}', space=vmem, size = 0x1000, scoped, tag = 'scoped mem for output reshape']
    %v2 = vld [vmem:[%s0] sm:$0x1]
    %vm3 = vcmask 130048
    %4 = vst.msk [vmem:[#allocation0] sm:$0x1] %vm3, %v2
    %s5 = scalar_lea.vmem %s0, 7
    %v6 = vld [vmem:[%s5] sm:$0x1]
    %7 = vrot.lane.b32.xlu0 %v6, 112
    %v8 = vpop.permute.xlu0 %7
    %vm9 = vcmask 1048448
    %10 = vst.msk [vmem:[#allocation0] sm:$0x1] %vm9, %v8
    %s11 = scalar_lea.vmem %s0, 6
    %v12 = vld [vmem:[%s11] sm:$0x1]
    %13 = vrot.lane.b32.xlu0 %v12, 96
    %v14 = vpop.permute.xlu0 %13
    %vm15 = vcmask 917248
    %16 = vst.msk [vmem:[#allocation0] sm:$0x1] %vm15, %v14
    %s17 = scalar_lea.vmem %s0, 5
    %v18 = vld [vmem:[%s17] sm:$0x1]
    %19 = vrot.lane.b32.xlu0 %v18, 80
    %v20 = vpop.permute.xlu0 %19
    %vm21 = vcmask 786048
    %22 = vst.msk [vmem:[#allocation0] sm:$0x1] %vm21, %v20
    %s23 = scalar_lea.vmem %s0, 4
    %v24 = vld [vmem:[%s23] sm:$0x1]
    %25 = vrot.lane.b32.xlu0 %v24, 64
    %v26 = vpop.permute.xlu0 %25
    %vm27 = vcmask 654848
    %28 = vst.msk [vmem:[#allocation0] sm:$0x1] %vm27, %v26
    %s29 = scalar_lea.vmem %s0, 3
    %v30 = vld [vmem:[%s29] sm:$0x1]
    %31 = vrot.lane.b32.xlu0 %v30, 48
    %v32 = vpop.permute.xlu0 %31
    %vm33 = vcmask 523648
    %34 = vst.msk [vmem:[#allocation0] sm:$0x1] %vm33, %v32
    %s35 = scalar_lea.vmem %s0, 2
    %v36 = vld [vmem:[%s35] sm:$0x1]
    %37 = vrot.lane.b32.xlu0 %v36, 32
    %v38 = vpop.permute.xlu0 %37
    %vm39 = vcmask 392448
    %40 = vst.msk [vmem:[#allocation0] sm:$0x1] %vm39, %v38
    %s41 = scalar_lea.vmem %s0, 1
    %v42 = vld [vmem:[%s41] sm:$0x1]
    %43 = vrot.lane.b32.xlu0 %v42, 16
    %v44 = vpop.permute.xlu0 %43
    %vm45 = vcmask 261248
    %46 = vst.msk [vmem:[#allocation0] sm:$0x1] %vm45, %v44
    %s48 = sshll.u32 1, 1
    %s49 = ssub.s32 %s48, 1
    %v51 = vld [vmem:[#allocation0] sm:%s49]
    %s52 = sshll.u32 1, 1
    %s53 = ssub.s32 %s52, 1
    %54 = vst [vmem:[%s1] sm:%s53] %v51

// kernel: ts_encoder_forward.1
$region0: #{ts_encoder_forward.1}
  #allocation0 [shape = 'u32[]', space=smem, size = 0x4, offset = 0x4, fixed_abs, tag = 'smem constant byte address 0x4 - core index']
  #allocation1 [shape = 'u32[144,128]{1,0:T(1,128)}', space=vmem, size = 0x12000, scoped, tag = 'internal scratch']
  %s0 = inlined_call_operand.vmem [shape: f32[1,1,128], index: 0, kind: input, shape index: {}]
  %s1 = inlined_call_operand.vmem [shape: f32[4,1,128], index: 1, kind: input, shape index: {}]
  %s2 = inlined_call_operand.vmem [shape: f32[16,1], index: 2, kind: input, shape index: {}]
  %s3 = inlined_call_operand.vmem [shape: f32[16,16], index: 3, kind: input, shape index: {}]
  %s4 = inlined_call_operand.vmem [shape: f32[4,16,48], index: 4, kind: input, shape index: {}]
  %s5 = inlined_call_operand.vmem [shape: f32[6,16,1], index: 5, kind: input, shape index: {}]
  %s6 = inlined_call_operand.vmem [shape: f32[1,16,128], index: 6, kind: output, shape index: {}]
  %s7 = sld [smem:[#allocation0]]
  $region34: #{ts_encoder_forward.1} parent=0
    _
  %s9 = ssub.s32 1, %s7
  %s10 = scalar_select 0, %s9, %s7
  // Predicated region
  $region2: #{ts_encoder_forward.1} parent=0 // pred_check
    _
  $region3: #{ts_encoder_forward.1} parent=0 // pred_check_branch
    %12 = sbr.rel (0) target = $region5
  $region4: #{ts_encoder_forward.1} parent=0 // pred_region
    _
  $region5: #{ts_encoder_forward.1} parent=0 // pred_fallthru
    _
  // Predicated region
  $region6: #{ts_encoder_forward.1} parent=0 // pred_check
    _
  $region7: #{ts_encoder_forward.1} parent=0 // pred_check_branch
    %14 = sbr.rel (0) target = $region9
  $region8: #{ts_encoder_forward.1} parent=0 // pred_region
    _
  $region9: #{ts_encoder_forward.1} parent=0 // pred_fallthru
    _
  // Predicated region
  $region10: #{ts_encoder_forward.1} parent=0 // pred_check
    _
  $region11: #{ts_encoder_forward.1} parent=0 // pred_check_branch
    %16 = sbr.rel (0) target = $region13
  $region12: #{ts_encoder_forward.1} parent=0 // pred_region
    _
  $region13: #{ts_encoder_forward.1} parent=0 // pred_fallthru
    _
  // Predicated region
  $region14: #{ts_encoder_forward.1} parent=0 // pred_check
    _
  $region15: #{ts_encoder_forward.1} parent=0 // pred_check_branch
    %18 = sbr.rel (0) target = $region17
  $region16: #{ts_encoder_forward.1} parent=0 // pred_region
    _
  $region17: #{ts_encoder_forward.1} parent=0 // pred_fallthru
    _
  // Predicated region
  $region18: #{ts_encoder_forward.1} parent=0 // pred_check
    _
  $region19: #{ts_encoder_forward.1} parent=0 // pred_check_branch
    %20 = sbr.rel (0) target = $region21
  $region20: #{ts_encoder_forward.1} parent=0 // pred_region
    _
  $region21: #{ts_encoder_forward.1} parent=0 // pred_fallthru
    _
  // Predicated region
  $region22: #{ts_encoder_forward.1} parent=0 // pred_check
    _
  $region23: #{ts_encoder_forward.1} parent=0 // pred_check_branch
    %22 = sbr.rel (0) target = $region25
  $region24: #{ts_encoder_forward.1} parent=0 // pred_region
    _
  $region25: #{ts_encoder_forward.1} parent=0 // pred_fallthru
    _
  %v23 = vld [vmem:[%s0] sm:$0x1]
  %v24 = vld [vmem:[%s1] sm:$0x1]
  %v25 = vld [vmem:[%s1 + $0x1] sm:$0x1]
  %v26 = vld [vmem:[%s1 + $0x2] sm:$0x1]
  %v27 = vld [vmem:[%s1 + $0x3] sm:$0x1]
  %vm28 = vcmp.eq.f32.partialorder %v23, %v23
  %v29 = vsel %vm28, %v23, 0.0
  %v30 = vsel %vm28, 1.0, 0.0
  %v31 = vld [vmem:[%s2] sm:$0xff]
  %v32 = vld [vmem:[%s2 + $0x8] sm:$0xff]
  %34 = vset.pattern.permute.xlu0 0
  %35 = vperm.xlu0 %34, %v31
  %v36 = vpop.permute.xlu0 %35
  %39 = vset.pattern.permute.xlu0 0
  %40 = vperm.xlu0 %39, %v32
  %v41 = vpop.permute.xlu0 %40
  %v44 = vlaneseq
  %v45 = vshrl.u32 %v44, 7
  %v46 = vsub.s32 0, %v45
  %v47 = vrot.slane %v29, %v46
  %v49 = vmul.f32 %v36, %v47
  %v50 = vmul.f32 %v41, %v47
  %v51 = vld [vmem:[%s5] sm:$0xff]
  %v52 = vld [vmem:[%s5 + $0x8] sm:$0xff]
  %54 = vset.pattern.permute.xlu0 0
  %55 = vperm.xlu0 %54, %v51
  %v56 = vpop.permute.xlu0 %55
  %59 = vset.pattern.permute.xlu0 0
  %60 = vperm.xlu0 %59, %v52
  %v61 = vpop.permute.xlu0 %60
  %v63 = vadd.f32 %v49, %v56
  %v64 = vadd.f32 %v50, %v61
  %v66 = vlaneseq
  %v67 = vshrl.u32 %v66, 7
  %v68 = vsub.s32 0, %v67
  %v69 = vrot.slane %v30, %v68
  %v71 = vmul.f32 %v63, %v69
  %v72 = vmul.f32 %v64, %v69
  %v73 = vmul.f32 %v71, 0.5
  %v74 = vmul.f32 %v72, 0.5
  %v75 = vmul.f32 %v71, 0.70710677
  %v76 = vmul.f32 %v72, 0.70710677
  %vm77 = vcmp.ge.f32.partialorder %v75, 0.0
  %vm78 = vcmp.ge.f32.partialorder %v76, 0.0
  %v79 = vsel %vm77, 1.0, -1.0
  %v80 = vsel %vm78, 1.0, -1.0
  %v81 = vand.u32 2147483647, %v75
  %v82 = vand.u32 2147483647, %v76
  %v83 = vmul.f32 %v81, 0.3275911
  %v84 = vmul.f32 %v82, 0.3275911
  %v85 = vadd.f32 %v83, 1.0
  %v86 = vadd.f32 %v84, 1.0
  %v87 = vrcp.pop %v85
  %v88 = vmul.f32 1.0, %v87
  %v89 = vrcp.pop %v86
  %v90 = vmul.f32 1.0, %v89
  %v91 = vmul.f32 %v88, 1.0614054
  %v92 = vmul.f32 %v90, 1.0614054
  %v93 = vadd.f32 %v91, -1.4531521
  %v94 = vadd.f32 %v92, -1.4531521
  %v95 = vmul.f32 %v93, %v88
  %v96 = vmul.f32 %v94, %v90
  %v97 = vadd.f32 %v95, 1.4214138
  %v98 = vadd.f32 %v96, 1.4214138
  %v99 = vmul.f32 %v97, %v88
  %v100 = vmul.f32 %v98, %v90
  %v101 = vadd.f32 %v99, -0.28449672
  %v102 = vadd.f32 %v100, -0.28449672
  %v103 = vmul.f32 %v101, %v88
  %v104 = vmul.f32 %v102, %v90
  %v105 = vadd.f32 %v103, 0.2548296
  %v106 = vadd.f32 %v104, 0.2548296
  %v107 = vmul.f32 %v105, %v88
  %v108 = vmul.f32 %v106, %v90
  %v109 = vsub.f32 0.0, %v81
  %v110 = vsub.f32 0.0, %v82
  %v111 = vmul.f32 %v109, %v81
  %v112 = vmul.f32 %v110, %v82
  %v113 = vmul.f32 %v111, 1.442695
  %v114 = vpow.pop %v113
  %v115 = vmul.f32 %v112, 1.442695
  %v116 = vpow.pop %v115
  %v117 = vmul.f32 %v107, %v114
  %v118 = vmul.f32 %v108, %v116
  %v119 = vsub.f32 1.0, %v117
  %v120 = vsub.f32 1.0, %v118
  %v121 = vmul.f32 %v79, %v119
  %v122 = vmul.f32 %v80, %v120
  %v123 = vadd.f32 %v121, 1.0
  %v124 = vadd.f32 %v122, 1.0
  %v125 = vmul.f32 %v73, %v123
  %v126 = vmul.f32 %v74, %v124
  %127 = vrot.lane.b32.xlu0 %v125, 1
  %v128 = vpop.permute.xlu0 %127
  %129 = vrot.lane.b32.xlu0 %v126, 1
  %v130 = vpop.permute.xlu0 %129
  %v132 = vlaneseq
  %v133 = vshrl.u32 %v132, 7
  %v134 = vsub.s32 0, %v133
  %v135 = vrot.slane %v24, %v134
  %v137 = vmul.f32 %v128, %v135
  %v138 = vmul.f32 %v130, %v135
  %139 = vrot.lane.b32.xlu0 %v125, 127
  %v140 = vpop.permute.xlu0 %139
  %141 = vrot.lane.b32.xlu0 %v126, 127
  %v142 = vpop.permute.xlu0 %141
  %v144 = vlaneseq
  %v145 = vshrl.u32 %v144, 7
  %v146 = vsub.s32 0, %v145
  %v147 = vrot.slane %v25, %v146
  %v149 = vmul.f32 %v140, %v147
  %v150 = vmul.f32 %v142, %v147
  %v151 = vld [vmem:[%s4] sm:$0xff]
  %v152 = vld [vmem:[%s4 + $0x8] sm:$0xff]
  %s153 = scalar_lea.vmem %s5, 16
  %v154 = vld [vmem:[%s153] sm:$0xff]
  %v155 = vld [vmem:[%s153 + $0x8] sm:$0xff]
  %157 = vset.pattern.permute.xlu0 0
  %158 = vperm.xlu0 %157, %v154
  %v159 = vpop.permute.xlu0 %158
  %162 = vset.pattern.permute.xlu0 0
  %163 = vperm.xlu0 %162, %v155
  %v164 = vpop.permute.xlu0 %163
  %vm166 = vcmask 392192
  %v168 = vsel %vm166, %v151, 0
  %v171 = vsel %vm166, %v152, 0
  %173 = vmatprep.subr.mxu0 0.0
  %174 = vmatpush1.msra.mxu0 0.0
  %175 = vmatprep.subr.mxu0 0.0
  %176 = vmatpush1.msra.mxu0 0.0
  %177 = vmatprep.subr.mxu0 0.0
  %178 = vmatpush1.msra.mxu0 0.0
  %179 = vmatprep.subr.mxu0 0.0
  %180 = vmatpush1.msra.mxu0 0.0
  %181 = vmatprep.subr.mxu0 0.0
  %182 = vmatpush1.msra.mxu0 0.0
  %183 = vmatprep.subr.mxu0 0.0
  %184 = vmatpush1.msra.mxu0 0.0
  %185 = vmatprep.subr.mxu0 0.0
  %186 = vmatpush1.msra.mxu0 0.0
  %187 = vmatprep.subr.mxu0 0.0
  %188 = vmatpush1.msra.mxu0 0.0
  %189 = vmatprep.subr.mxu0 0.0
  %190 = vmatpush1.msra.mxu0 0.0
  %191 = vmatprep.subr.mxu0 0.0
  %192 = vmatpush1.msra.mxu0 0.0
  %193 = vmatprep.subr.mxu0 0.0
  %194 = vmatpush1.msra.mxu0 %v150
  %195 = vmatprep.subr.mxu0 0.0
  %196 = vmatpush1.msra.mxu0 %v149
  %197 = vmatprep.subr.mxu0 0.0
  %198 = vmatpush1.msra.mxu0 %v126
  %199 = vmatprep.subr.mxu0 0.0
  %200 = vmatpush1.msra.mxu0 %v125
  %201 = vmatprep.subr.mxu0 0.0
  %202 = vmatpush1.msra.mxu0 %v138
  %203 = vmatprep.subr.mxu0 0.0
  %204 = vmatpush1.msra.mxu0 %v137
  %205 = vmatprep.subr.mxu0 0.0
  %206 = vmatpush2.msra.mxu0 0.0
  %207 = vmatprep.subr.mxu0 0.0
  %208 = vmatpush2.msra.mxu0 0.0
  %209 = vmatprep.subr.mxu0 0.0
  %210 = vmatpush2.msra.mxu0 0.0
  %211 = vmatprep.subr.mxu0 0.0
  %212 = vmatpush2.msra.mxu0 0.0
  %213 = vmatprep.subr.mxu0 0.0
  %214 = vmatpush2.msra.mxu0 0.0
  %215 = vmatprep.subr.mxu0 0.0
  %216 = vmatpush2.msra.mxu0 0.0
  %217 = vmatprep.subr.mxu0 0.0
  %218 = vmatpush2.msra.mxu0 0.0
  %219 = vmatprep.subr.mxu0 0.0
  %220 = vmatpush2.msra.mxu0 0.0
  %221 = vmatprep.subr.mxu0 0.0
  %222 = vmatpush2.msra.mxu0 0.0
  %223 = vmatprep.subr.mxu0 0.0
  %224 = vmatpush2.msra.mxu0 0.0
  %225 = vmatprep.subr.mxu0 0.0
  %226 = vmatpush2.msra.mxu0 0.0
  %227 = vmatprep.subr.mxu0 0.0
  %228 = vmatpush2.msra.mxu0 0.0
  %229 = vmatprep.subr.mxu0 0.0
  %230 = vmatpush2.msra.mxu0 0.0
  %231 = vmatprep.subr.mxu0 0.0
  %232 = vmatpush2.msra.mxu0 0.0
  %233 = vmatprep.subr.mxu0 0.0
  %234 = vmatpush2.msra.mxu0 0.0
  %235 = vmatprep.subr.mxu0 0.0
  %236 = vmatpush2.msra.mxu0 0.0
  %237 = vmatprep.mubr.f32.mxu0 0.0
  %238 = vmatmul.mubr.f32.gmra.mxu0 %v168
  %v239 = vpop.f32.mrf.mxu0
  %v240 = vadd.f32 %v159, %v239
  %v241 = vpop.f32.mrf.mxu0
  %242 = vmatprep.mubr.f32.mxu0 0.0
  %243 = vmatmul.mubr.f32.gmra.mxu0 %v171
  %v244 = vpop.f32.mrf.mxu0
  %v245 = vadd.f32 %v164, %v244
  %v246 = vpop.f32.mrf.mxu0
  %247 = vdwg.mxu0
  %v248 = vmul.f32 %v240, 0.5
  %v249 = vmul.f32 %v245, 0.5
  %v250 = vmul.f32 %v240, 0.70710677
  %v251 = vmul.f32 %v245, 0.70710677
  %vm252 = vcmp.ge.f32.partialorder %v250, 0.0
  %vm253 = vcmp.ge.f32.partialorder %v251, 0.0
  %v254 = vsel %vm252, 1.0, -1.0
  %v255 = vsel %vm253, 1.0, -1.0
  %v256 = vand.u32 2147483647, %v250
  %v257 = vand.u32 2147483647, %v251
  %v258 = vmul.f32 %v256, 0.3275911
  %v259 = vmul.f32 %v257, 0.3275911
  %v260 = vadd.f32 %v258, 1.0
  %v261 = vadd.f32 %v259, 1.0
  %v262 = vrcp.pop %v260
  %v263 = vmul.f32 1.0, %v262
  %v264 = vrcp.pop %v261
  %v265 = vmul.f32 1.0, %v264
  %v266 = vmul.f32 %v263, 1.0614054
  %v267 = vmul.f32 %v265, 1.0614054
  %v268 = vadd.f32 %v266, -1.4531521
  %v269 = vadd.f32 %v267, -1.4531521
  %v270 = vmul.f32 %v268, %v263
  %v271 = vmul.f32 %v269, %v265
  %v272 = vadd.f32 %v270, 1.4214138
  %v273 = vadd.f32 %v271, 1.4214138
  %v274 = vmul.f32 %v272, %v263
  %v275 = vmul.f32 %v273, %v265
  %v276 = vadd.f32 %v274, -0.28449672
  %v277 = vadd.f32 %v275, -0.28449672
  %v278 = vmul.f32 %v276, %v263
  %v279 = vmul.f32 %v277, %v265
  %v280 = vadd.f32 %v278, 0.2548296
  %v281 = vadd.f32 %v279, 0.2548296
  %v282 = vmul.f32 %v280, %v263
  %v283 = vmul.f32 %v281, %v265
  %v284 = vsub.f32 0.0, %v256
  %v285 = vsub.f32 0.0, %v257
  %v286 = vmul.f32 %v284, %v256
  %v287 = vmul.f32 %v285, %v257
  %v288 = vmul.f32 %v286, 1.442695
  %v289 = vpow.pop %v288
  %v290 = vmul.f32 %v287, 1.442695
  %v291 = vpow.pop %v290
  %v292 = vmul.f32 %v282, %v289
  %v293 = vmul.f32 %v283, %v291
  %v294 = vsub.f32 1.0, %v292
  %v295 = vsub.f32 1.0, %v293
  %v296 = vmul.f32 %v254, %v294
  %v297 = vmul.f32 %v255, %v295
  %v298 = vadd.f32 %v296, 1.0
  %v299 = vadd.f32 %v297, 1.0
  %v300 = vmul.f32 %v248, %v298
  %v301 = vmul.f32 %v249, %v299
  %302 = vrot.lane.b32.xlu0 %v300, 1
  %v303 = vpop.permute.xlu0 %302
  %304 = vrot.lane.b32.xlu0 %v301, 1
  %v305 = vpop.permute.xlu0 %304
  %v306 = vmul.f32 %v303, %v135
  %v307 = vmul.f32 %v305, %v135
  %308 = vrot.lane.b32.xlu0 %v300, 127
  %v309 = vpop.permute.xlu0 %308
  %310 = vrot.lane.b32.xlu0 %v301, 127
  %v311 = vpop.permute.xlu0 %310
  %v312 = vmul.f32 %v309, %v147
  %v313 = vmul.f32 %v311, %v147
  %s314 = scalar_lea.vmem %s4, 16
  %v315 = vld [vmem:[%s314] sm:$0xff]
  %v316 = vld [vmem:[%s314 + $0x8] sm:$0xff]
  %s317 = scalar_lea.vmem %s5, 32
  %v318 = vld [vmem:[%s317] sm:$0xff]
  %v319 = vld [vmem:[%s317 + $0x8] sm:$0xff]
  %321 = vset.pattern.permute.xlu0 0
  %322 = vperm.xlu0 %321, %v318
  %v323 = vpop.permute.xlu0 %322
  %326 = vset.pattern.permute.xlu0 0
  %327 = vperm.xlu0 %326, %v319
  %v328 = vpop.permute.xlu0 %327
  %v331 = vsel %vm166, %v315, 0
  %v334 = vsel %vm166, %v316, 0
  %336 = vmatprep.subr.mxu0 0.0
  %337 = vmatpush1.msra.mxu0 0.0
  %338 = vmatprep.subr.mxu0 0.0
  %339 = vmatpush1.msra.mxu0 0.0
  %340 = vmatprep.subr.mxu0 0.0
  %341 = vmatpush1.msra.mxu0 0.0
  %342 = vmatprep.subr.mxu0 0.0
  %343 = vmatpush1.msra.mxu0 0.0
  %344 = vmatprep.subr.mxu0 0.0
  %345 = vmatpush1.msra.mxu0 0.0
  %346 = vmatprep.subr.mxu0 0.0
  %347 = vmatpush1.msra.mxu0 0.0
  %348 = vmatprep.subr.mxu0 0.0
  %349 = vmatpush1.msra.mxu0 0.0
  %350 = vmatprep.subr.mxu0 0.0
  %351 = vmatpush1.msra.mxu0 0.0
  %352 = vmatprep.subr.mxu0 0.0
  %353 = vmatpush1.msra.mxu0 0.0
  %354 = vmatprep.subr.mxu0 0.0
  %355 = vmatpush1.msra.mxu0 0.0
  %356 = vmatprep.subr.mxu0 0.0
  %357 = vmatpush1.msra.mxu0 %v313
  %358 = vmatprep.subr.mxu0 0.0
  %359 = vmatpush1.msra.mxu0 %v312
  %360 = vmatprep.subr.mxu0 0.0
  %361 = vmatpush1.msra.mxu0 %v301
  %362 = vmatprep.subr.mxu0 0.0
  %363 = vmatpush1.msra.mxu0 %v300
  %364 = vmatprep.subr.mxu0 0.0
  %365 = vmatpush1.msra.mxu0 %v307
  %366 = vmatprep.subr.mxu0 0.0
  %367 = vmatpush1.msra.mxu0 %v306
  %368 = vmatprep.subr.mxu0 0.0
  %369 = vmatpush2.msra.mxu0 0.0
  %370 = vmatprep.subr.mxu0 0.0
  %371 = vmatpush2.msra.mxu0 0.0
  %372 = vmatprep.subr.mxu0 0.0
  %373 = vmatpush2.msra.mxu0 0.0
  %374 = vmatprep.subr.mxu0 0.0
  %375 = vmatpush2.msra.mxu0 0.0
  %376 = vmatprep.subr.mxu0 0.0
  %377 = vmatpush2.msra.mxu0 0.0
  %378 = vmatprep.subr.mxu0 0.0
  %379 = vmatpush2.msra.mxu0 0.0
  %380 = vmatprep.subr.mxu0 0.0
  %381 = vmatpush2.msra.mxu0 0.0
  %382 = vmatprep.subr.mxu0 0.0
  %383 = vmatpush2.msra.mxu0 0.0
  %384 = vmatprep.subr.mxu0 0.0
  %385 = vmatpush2.msra.mxu0 0.0
  %386 = vmatprep.subr.mxu0 0.0
  %387 = vmatpush2.msra.mxu0 0.0
  %388 = vmatprep.subr.mxu0 0.0
  %389 = vmatpush2.msra.mxu0 0.0
  %390 = vmatprep.subr.mxu0 0.0
  %391 = vmatpush2.msra.mxu0 0.0
  %392 = vmatprep.subr.mxu0 0.0
  %393 = vmatpush2.msra.mxu0 0.0
  %394 = vmatprep.subr.mxu0 0.0
  %395 = vmatpush2.msra.mxu0 0.0
  %396 = vmatprep.subr.mxu0 0.0
  %397 = vmatpush2.msra.mxu0 0.0
  %398 = vmatprep.subr.mxu0 0.0
  %399 = vmatpush2.msra.mxu0 0.0
  %400 = vmatprep.mubr.f32.mxu0 0.0
  %401 = vmatmul.mubr.f32.gmra.mxu0 %v331
  %v402 = vpop.f32.mrf.mxu0
  %v403 = vadd.f32 %v323, %v402
  %v404 = vpop.f32.mrf.mxu0
  %405 = vmatprep.mubr.f32.mxu0 0.0
  %406 = vmatmul.mubr.f32.gmra.mxu0 %v334
  %v407 = vpop.f32.mrf.mxu0
  %v408 = vadd.f32 %v328, %v407
  %v409 = vpop.f32.mrf.mxu0
  %410 = vdwg.mxu0
  %v411 = vadd.f32 %v403, %v71
  %v412 = vadd.f32 %v408, %v72
  %v413 = vld [vmem:[%s3] sm:$0xff]
  %v414 = vld [vmem:[%s3 + $0x8] sm:$0xff]
  %s415 = scalar_lea.vmem %s5, 48
  %v416 = vld [vmem:[%s415] sm:$0xff]
  %v417 = vld [vmem:[%s415 + $0x8] sm:$0xff]
  %419 = vset.pattern.permute.xlu0 0
  %420 = vperm.xlu0 %419, %v416
  %v421 = vpop.permute.xlu0 %420
  %424 = vset.pattern.permute.xlu0 0
  %425 = vperm.xlu0 %424, %v417
  %v426 = vpop.permute.xlu0 %425
  %vm428 = vcmask 130048
  %v430 = vsel %vm428, %v413, 0
  %v433 = vsel %vm428, %v414, 0
  %435 = vmatprep.subr.mxu0 0.0
  %436 = vmatpush1.msra.mxu0 0.0
  %437 = vmatprep.subr.mxu0 0.0
  %438 = vmatpush1.msra.mxu0 0.0
  %439 = vmatprep.subr.mxu0 0.0
  %440 = vmatpush1.msra.mxu0 0.0
  %441 = vmatprep.subr.mxu0 0.0
  %442 = vmatpush1.msra.mxu0 0.0
  %443 = vmatprep.subr.mxu0 0.0
  %444 = vmatpush1.msra.mxu0 0.0
  %445 = vmatprep.subr.mxu0 0.0
  %446 = vmatpush1.msra.mxu0 0.0
  %447 = vmatprep.subr.mxu0 0.0
  %448 = vmatpush1.msra.mxu0 0.0
  %449 = vmatprep.subr.mxu0 0.0
  %450 = vmatpush1.msra.mxu0 0.0
  %451 = vmatprep.subr.mxu0 0.0
  %452 = vmatpush1.msra.mxu0 0.0
  %453 = vmatprep.subr.mxu0 0.0
  %454 = vmatpush1.msra.mxu0 0.0
  %455 = vmatprep.subr.mxu0 0.0
  %456 = vmatpush1.msra.mxu0 0.0
  %457 = vmatprep.subr.mxu0 0.0
  %458 = vmatpush1.msra.mxu0 0.0
  %459 = vmatprep.subr.mxu0 0.0
  %460 = vmatpush1.msra.mxu0 0.0
  %461 = vmatprep.subr.mxu0 0.0
  %462 = vmatpush1.msra.mxu0 0.0
  %463 = vmatprep.subr.mxu0 0.0
  %464 = vmatpush1.msra.mxu0 %v412
  %465 = vmatprep.subr.mxu0 0.0
  %466 = vmatpush1.msra.mxu0 %v411
  %467 = vmatprep.subr.mxu0 0.0
  %468 = vmatpush2.msra.mxu0 0.0
  %469 = vmatprep.subr.mxu0 0.0
  %470 = vmatpush2.msra.mxu0 0.0
  %471 = vmatprep.subr.mxu0 0.0
  %472 = vmatpush2.msra.mxu0 0.0
  %473 = vmatprep.subr.mxu0 0.0
  %474 = vmatpush2.msra.mxu0 0.0
  %475 = vmatprep.subr.mxu0 0.0
  %476 = vmatpush2.msra.mxu0 0.0
  %477 = vmatprep.subr.mxu0 0.0
  %478 = vmatpush2.msra.mxu0 0.0
  %479 = vmatprep.subr.mxu0 0.0
  %480 = vmatpush2.msra.mxu0 0.0
  %481 = vmatprep.subr.mxu0 0.0
  %482 = vmatpush2.msra.mxu0 0.0
  %483 = vmatprep.subr.mxu0 0.0
  %484 = vmatpush2.msra.mxu0 0.0
  %485 = vmatprep.subr.mxu0 0.0
  %486 = vmatpush2.msra.mxu0 0.0
  %487 = vmatprep.subr.mxu0 0.0
  %488 = vmatpush2.msra.mxu0 0.0
  %489 = vmatprep.subr.mxu0 0.0
  %490 = vmatpush2.msra.mxu0 0.0
  %491 = vmatprep.subr.mxu0 0.0
  %492 = vmatpush2.msra.mxu0 0.0
  %493 = vmatprep.subr.mxu0 0.0
  %494 = vmatpush2.msra.mxu0 0.0
  %495 = vmatprep.subr.mxu0 0.0
  %496 = vmatpush2.msra.mxu0 0.0
  %497 = vmatprep.subr.mxu0 0.0
  %498 = vmatpush2.msra.mxu0 0.0
  %499 = vmatprep.mubr.f32.mxu0 0.0
  %500 = vmatmul.mubr.f32.gmra.mxu0 %v430
  %v501 = vpop.f32.mrf.mxu0
  %v502 = vadd.f32 %v421, %v501
  %v503 = vpop.f32.mrf.mxu0
  %504 = vmatprep.mubr.f32.mxu0 0.0
  %505 = vmatmul.mubr.f32.gmra.mxu0 %v433
  %v506 = vpop.f32.mrf.mxu0
  %v507 = vadd.f32 %v426, %v506
  %v508 = vpop.f32.mrf.mxu0
  %509 = vdwg.mxu0
  %v510 = vmul.f32 %v411, 0.5
  %v511 = vmul.f32 %v412, 0.5
  %v512 = vmul.f32 %v411, 0.70710677
  %v513 = vmul.f32 %v412, 0.70710677
  %vm514 = vcmp.ge.f32.partialorder %v512, 0.0
  %vm515 = vcmp.ge.f32.partialorder %v513, 0.0
  %v516 = vsel %vm514, 1.0, -1.0
  %v517 = vsel %vm515, 1.0, -1.0
  %v518 = vand.u32 2147483647, %v512
  %v519 = vand.u32 2147483647, %v513
  %v520 = vmul.f32 %v518, 0.3275911
  %v521 = vmul.f32 %v519, 0.3275911
  %v522 = vadd.f32 %v520, 1.0
  %v523 = vadd.f32 %v521, 1.0
  %v524 = vrcp.pop %v522
  %v525 = vmul.f32 1.0, %v524
  %v526 = vrcp.pop %v523
  %v527 = vmul.f32 1.0, %v526
  %v528 = vmul.f32 %v525, 1.0614054
  %v529 = vmul.f32 %v527, 1.0614054
  %v530 = vadd.f32 %v528, -1.4531521
  %v531 = vadd.f32 %v529, -1.4531521
  %v532 = vmul.f32 %v530, %v525
  %v533 = vmul.f32 %v531, %v527
  %v534 = vadd.f32 %v532, 1.4214138
  %v535 = vadd.f32 %v533, 1.4214138
  %v536 = vmul.f32 %v534, %v525
  %v537 = vmul.f32 %v535, %v527
  %v538 = vadd.f32 %v536, -0.28449672
  %v539 = vadd.f32 %v537, -0.28449672
  %v540 = vmul.f32 %v538, %v525
  %v541 = vmul.f32 %v539, %v527
  %v542 = vadd.f32 %v540, 0.2548296
  %v543 = vadd.f32 %v541, 0.2548296
  %v544 = vmul.f32 %v542, %v525
  %v545 = vmul.f32 %v543, %v527
  %v546 = vsub.f32 0.0, %v518
  %v547 = vsub.f32 0.0, %v519
  %v548 = vmul.f32 %v546, %v518
  %v549 = vmul.f32 %v547, %v519
  %v550 = vmul.f32 %v548, 1.442695
  %v551 = vpow.pop %v550
  %v552 = vmul.f32 %v549, 1.442695
  %v553 = vpow.pop %v552
  %v554 = vmul.f32 %v544, %v551
  %v555 = vmul.f32 %v545, %v553
  %v556 = vsub.f32 1.0, %v554
  %v557 = vsub.f32 1.0, %v555
  %v558 = vmul.f32 %v516, %v556
  %v559 = vmul.f32 %v517, %v557
  %v560 = vadd.f32 %v558, 1.0
  %v561 = vadd.f32 %v559, 1.0
  %v562 = vmul.f32 %v510, %v560
  %v563 = vmul.f32 %v511, %v561
  %564 = vrot.lane.b32.xlu0 %v562, 2
  %v565 = vpop.permute.xlu0 %564
  %566 = vrot.lane.b32.xlu0 %v563, 2
  %v567 = vpop.permute.xlu0 %566
  %v569 = vlaneseq
  %v570 = vshrl.u32 %v569, 7
  %v571 = vsub.s32 0, %v570
  %v572 = vrot.slane %v26, %v571
  %v574 = vmul.f32 %v565, %v572
  %v575 = vmul.f32 %v567, %v572
  %576 = vrot.lane.b32.xlu0 %v562, 126
  %v577 = vpop.permute.xlu0 %576
  %578 = vrot.lane.b32.xlu0 %v563, 126
  %v579 = vpop.permute.xlu0 %578
  %v581 = vlaneseq
  %v582 = vshrl.u32 %v581, 7
  %v583 = vsub.s32 0, %v582
  %v584 = vrot.slane %v27, %v583
  %v586 = vmul.f32 %v577, %v584
  %v587 = vmul.f32 %v579, %v584
  %s588 = scalar_lea.vmem %s4, 32
  %v589 = vld [vmem:[%s588] sm:$0xff]
  %v590 = vld [vmem:[%s588 + $0x8] sm:$0xff]
  %s591 = scalar_lea.vmem %s5, 64
  %v592 = vld [vmem:[%s591] sm:$0xff]
  %v593 = vld [vmem:[%s591 + $0x8] sm:$0xff]
  %595 = vset.pattern.permute.xlu0 0
  %596 = vperm.xlu0 %595, %v592
  %v597 = vpop.permute.xlu0 %596
  %600 = vset.pattern.permute.xlu0 0
  %601 = vperm.xlu0 %600, %v593
  %v602 = vpop.permute.xlu0 %601
  %v605 = vsel %vm166, %v589, 0
  %v608 = vsel %vm166, %v590, 0
  %610 = vmatprep.subr.mxu0 0.0
  %611 = vmatpush1.msra.mxu0 0.0
  %612 = vmatprep.subr.mxu0 0.0
  %613 = vmatpush1.msra.mxu0 0.0
  %614 = vmatprep.subr.mxu0 0.0
  %615 = vmatpush1.msra.mxu0 0.0
  %616 = vmatprep.subr.mxu0 0.0
  %617 = vmatpush1.msra.mxu0 0.0
  %618 = vmatprep.subr.mxu0 0.0
  %619 = vmatpush1.msra.mxu0 0.0
  %620 = vmatprep.subr.mxu0 0.0
  %621 = vmatpush1.msra.mxu0 0.0
  %622 = vmatprep.subr.mxu0 0.0
  %623 = vmatpush1.msra.mxu0 0.0
  %624 = vmatprep.subr.mxu0 0.0
  %625 = vmatpush1.msra.mxu0 0.0
  %626 = vmatprep.subr.mxu0 0.0
  %627 = vmatpush1.msra.mxu0 0.0
  %628 = vmatprep.subr.mxu0 0.0
  %629 = vmatpush1.msra.mxu0 0.0
  %630 = vmatprep.subr.mxu0 0.0
  %631 = vmatpush1.msra.mxu0 %v587
  %632 = vmatprep.subr.mxu0 0.0
  %633 = vmatpush1.msra.mxu0 %v586
  %634 = vmatprep.subr.mxu0 0.0
  %635 = vmatpush1.msra.mxu0 %v563
  %636 = vmatprep.subr.mxu0 0.0
  %637 = vmatpush1.msra.mxu0 %v562
  %638 = vmatprep.subr.mxu0 0.0
  %639 = vmatpush1.msra.mxu0 %v575
  %640 = vmatprep.subr.mxu0 0.0
  %641 = vmatpush1.msra.mxu0 %v574
  %642 = vmatprep.subr.mxu0 0.0
  %643 = vmatpush2.msra.mxu0 0.0
  %644 = vmatprep.subr.mxu0 0.0
  %645 = vmatpush2.msra.mxu0 0.0
  %646 = vmatprep.subr.mxu0 0.0
  %647 = vmatpush2.msra.mxu0 0.0
  %648 = vmatprep.subr.mxu0 0.0
  %649 = vmatpush2.msra.mxu0 0.0
  %650 = vmatprep.subr.mxu0 0.0
  %651 = vmatpush2.msra.mxu0 0.0
  %652 = vmatprep.subr.mxu0 0.0
  %653 = vmatpush2.msra.mxu0 0.0
  %654 = vmatprep.subr.mxu0 0.0
  %655 = vmatpush2.msra.mxu0 0.0
  %656 = vmatprep.subr.mxu0 0.0
  %657 = vmatpush2.msra.mxu0 0.0
  %658 = vmatprep.subr.mxu0 0.0
  %659 = vmatpush2.msra.mxu0 0.0
  %660 = vmatprep.subr.mxu0 0.0
  %661 = vmatpush2.msra.mxu0 0.0
  %662 = vmatprep.subr.mxu0 0.0
  %663 = vmatpush2.msra.mxu0 0.0
  %664 = vmatprep.subr.mxu0 0.0
  %665 = vmatpush2.msra.mxu0 0.0
  %666 = vmatprep.subr.mxu0 0.0
  %667 = vmatpush2.msra.mxu0 0.0
  %668 = vmatprep.subr.mxu0 0.0
  %669 = vmatpush2.msra.mxu0 0.0
  %670 = vmatprep.subr.mxu0 0.0
  %671 = vmatpush2.msra.mxu0 0.0
  %672 = vmatprep.subr.mxu0 0.0
  %673 = vmatpush2.msra.mxu0 0.0
  %674 = vmatprep.mubr.f32.mxu0 0.0
  %675 = vmatmul.mubr.f32.gmra.mxu0 %v605
  %v676 = vpop.f32.mrf.mxu0
  %v677 = vadd.f32 %v597, %v676
  %v678 = vpop.f32.mrf.mxu0
  %679 = vmatprep.mubr.f32.mxu0 0.0
  %680 = vmatmul.mubr.f32.gmra.mxu0 %v608
  %v681 = vpop.f32.mrf.mxu0
  %v682 = vadd.f32 %v602, %v681
  %v683 = vpop.f32.mrf.mxu0
  %684 = vdwg.mxu0
  %v685 = vmul.f32 %v677, 0.5
  %v686 = vmul.f32 %v682, 0.5
  %v687 = vmul.f32 %v677, 0.70710677
  %v688 = vmul.f32 %v682, 0.70710677
  %vm689 = vcmp.ge.f32.partialorder %v687, 0.0
  %vm690 = vcmp.ge.f32.partialorder %v688, 0.0
  %v691 = vsel %vm689, 1.0, -1.0
  %v692 = vsel %vm690, 1.0, -1.0
  %v693 = vand.u32 2147483647, %v687
  %v694 = vand.u32 2147483647, %v688
  %v695 = vmul.f32 %v693, 0.3275911
  %v696 = vmul.f32 %v694, 0.3275911
  %v697 = vadd.f32 %v695, 1.0
  %v698 = vadd.f32 %v696, 1.0
  %v699 = vrcp.pop %v697
  %v700 = vmul.f32 1.0, %v699
  %v701 = vrcp.pop %v698
  %v702 = vmul.f32 1.0, %v701
  %v703 = vmul.f32 %v700, 1.0614054
  %v704 = vmul.f32 %v702, 1.0614054
  %v705 = vadd.f32 %v703, -1.4531521
  %v706 = vadd.f32 %v704, -1.4531521
  %v707 = vmul.f32 %v705, %v700
  %v708 = vmul.f32 %v706, %v702
  %v709 = vadd.f32 %v707, 1.4214138
  %v710 = vadd.f32 %v708, 1.4214138
  %v711 = vmul.f32 %v709, %v700
  %v712 = vmul.f32 %v710, %v702
  %v713 = vadd.f32 %v711, -0.28449672
  %v714 = vadd.f32 %v712, -0.28449672
  %v715 = vmul.f32 %v713, %v700
  %v716 = vmul.f32 %v714, %v702
  %v717 = vadd.f32 %v715, 0.2548296
  %v718 = vadd.f32 %v716, 0.2548296
  %v719 = vmul.f32 %v717, %v700
  %v720 = vmul.f32 %v718, %v702
  %v721 = vsub.f32 0.0, %v693
  %v722 = vsub.f32 0.0, %v694
  %v723 = vmul.f32 %v721, %v693
  %v724 = vmul.f32 %v722, %v694
  %v725 = vmul.f32 %v723, 1.442695
  %v726 = vpow.pop %v725
  %v727 = vmul.f32 %v724, 1.442695
  %v728 = vpow.pop %v727
  %v729 = vmul.f32 %v719, %v726
  %v730 = vmul.f32 %v720, %v728
  %v731 = vsub.f32 1.0, %v729
  %v732 = vsub.f32 1.0, %v730
  %v733 = vmul.f32 %v691, %v731
  %v734 = vmul.f32 %v692, %v732
  %v735 = vadd.f32 %v733, 1.0
  %v736 = vadd.f32 %v734, 1.0
  %v737 = vmul.f32 %v685, %v735
  %v738 = vmul.f32 %v686, %v736
  %739 = vrot.lane.b32.xlu0 %v737, 2
  %v740 = vpop.permute.xlu0 %739
  %741 = vrot.lane.b32.xlu0 %v738, 2
  %v742 = vpop.permute.xlu0 %741
  %v743 = vmul.f32 %v740, %v572
  %v744 = vmul.f32 %v742, %v572
  %745 = vrot.lane.b32.xlu0 %v737, 126
  %v746 = vpop.permute.xlu0 %745
  %747 = vrot.lane.b32.xlu0 %v738, 126
  %v748 = vpop.permute.xlu0 %747
  %v749 = vmul.f32 %v746, %v584
  %v750 = vmul.f32 %v748, %v584
  %s751 = scalar_lea.vmem %s4, 48
  %v752 = vld [vmem:[%s751] sm:$0xff]
  %v753 = vld [vmem:[%s751 + $0x8] sm:$0xff]
  %s754 = scalar_lea.vmem %s5, 80
  %v755 = vld [vmem:[%s754] sm:$0xff]
  %v756 = vld [vmem:[%s754 + $0x8] sm:$0xff]
  %758 = vset.pattern.permute.xlu0 0
  %759 = vperm.xlu0 %758, %v755
  %v760 = vpop.permute.xlu0 %759
  %763 = vset.pattern.permute.xlu0 0
  %764 = vperm.xlu0 %763, %v756
  %v765 = vpop.permute.xlu0 %764
  %v768 = vsel %vm166, %v752, 0
  %v771 = vsel %vm166, %v753, 0
  %773 = vmatprep.subr.mxu0 0.0
  %774 = vmatpush1.msra.mxu0 0.0
  %775 = vmatprep.subr.mxu0 0.0
  %776 = vmatpush1.msra.mxu0 0.0
  %777 = vmatprep.subr.mxu0 0.0
  %778 = vmatpush1.msra.mxu0 0.0
  %779 = vmatprep.subr.mxu0 0.0
  %780 = vmatpush1.msra.mxu0 0.0
  %781 = vmatprep.subr.mxu0 0.0
  %782 = vmatpush1.msra.mxu0 0.0
  %783 = vmatprep.subr.mxu0 0.0
  %784 = vmatpush1.msra.mxu0 0.0
  %785 = vmatprep.subr.mxu0 0.0
  %786 = vmatpush1.msra.mxu0 0.0
  %787 = vmatprep.subr.mxu0 0.0
  %788 = vmatpush1.msra.mxu0 0.0
  %789 = vmatprep.subr.mxu0 0.0
  %790 = vmatpush1.msra.mxu0 0.0
  %791 = vmatprep.subr.mxu0 0.0
  %792 = vmatpush1.msra.mxu0 0.0
  %793 = vmatprep.subr.mxu0 0.0
  %794 = vmatpush1.msra.mxu0 %v750
  %795 = vmatprep.subr.mxu0 0.0
  %796 = vmatpush1.msra.mxu0 %v749
  %797 = vmatprep.subr.mxu0 0.0
  %798 = vmatpush1.msra.mxu0 %v738
  %799 = vmatprep.subr.mxu0 0.0
  %800 = vmatpush1.msra.mxu0 %v737
  %801 = vmatprep.subr.mxu0 0.0
  %802 = vmatpush1.msra.mxu0 %v744
  %803 = vmatprep.subr.mxu0 0.0
  %804 = vmatpush1.msra.mxu0 %v743
  %805 = vmatprep.subr.mxu0 0.0
  %806 = vmatpush2.msra.mxu0 0.0
  %807 = vmatprep.subr.mxu0 0.0
  %808 = vmatpush2.msra.mxu0 0.0
  %809 = vmatprep.subr.mxu0 0.0
  %810 = vmatpush2.msra.mxu0 0.0
  %811 = vmatprep.subr.mxu0 0.0
  %812 = vmatpush2.msra.mxu0 0.0
  %813 = vmatprep.subr.mxu0 0.0
  %814 = vmatpush2.msra.mxu0 0.0
  %815 = vmatprep.subr.mxu0 0.0
  %816 = vmatpush2.msra.mxu0 0.0
  %817 = vmatprep.subr.mxu0 0.0
  %818 = vmatpush2.msra.mxu0 0.0
  %819 = vmatprep.subr.mxu0 0.0
  %820 = vmatpush2.msra.mxu0 0.0
  %821 = vmatprep.subr.mxu0 0.0
  %822 = vmatpush2.msra.mxu0 0.0
  %823 = vmatprep.subr.mxu0 0.0
  %824 = vmatpush2.msra.mxu0 0.0
  %825 = vmatprep.subr.mxu0 0.0
  %826 = vmatpush2.msra.mxu0 0.0
  %827 = vmatprep.subr.mxu0 0.0
  %828 = vmatpush2.msra.mxu0 0.0
  %829 = vmatprep.subr.mxu0 0.0
  %830 = vmatpush2.msra.mxu0 0.0
  %831 = vmatprep.subr.mxu0 0.0
  %832 = vmatpush2.msra.mxu0 0.0
  %833 = vmatprep.subr.mxu0 0.0
  %834 = vmatpush2.msra.mxu0 0.0
  %835 = vmatprep.subr.mxu0 0.0
  %836 = vmatpush2.msra.mxu0 0.0
  %837 = vmatprep.mubr.f32.mxu0 0.0
  %838 = vmatmul.mubr.f32.gmra.mxu0 %v768
  %v839 = vpop.f32.mrf.mxu0
  %v840 = vadd.f32 %v760, %v839
  %v841 = vpop.f32.mrf.mxu0
  %842 = vmatprep.mubr.f32.mxu0 0.0
  %843 = vmatmul.mubr.f32.gmra.mxu0 %v771
  %v844 = vpop.f32.mrf.mxu0
  %v845 = vadd.f32 %v765, %v844
  %v846 = vpop.f32.mrf.mxu0
  %847 = vdwg.mxu0
  %v848 = vadd.f32 %v840, %v502
  %v849 = vadd.f32 %v845, %v507
  %850 = vst [vmem:[%s6] sm:$0xff] %v848
  %851 = vst [vmem:[%s6 + $0x8] sm:$0xff] %v849
  // Predicated region
  $region26: #{ts_encoder_forward.1} parent=0 // pred_check
    _
  $region27: #{ts_encoder_forward.1} parent=0 // pred_check_branch
    %853 = sbr.rel (0) target = $region29
  $region28: #{ts_encoder_forward.1} parent=0 // pred_region
    _
  $region29: #{ts_encoder_forward.1} parent=0 // pred_fallthru
    _
  // Predicated region
  $region30: #{ts_encoder_forward.1} parent=0 // pred_check
    _
  $region31: #{ts_encoder_forward.1} parent=0 // pred_check_branch
    %855 = sbr.rel (0) target = $region33
  $region32: #{ts_encoder_forward.1} parent=0 // pred_region
    _
  $region33: #{ts_encoder_forward.1} parent=0 // pred_fallthru
    _

</llo_original>
